<compile_context>
chip_gen: v7x
topology: tpu7x:2x2x1
jax: 0.10.0
libtpu: 0.0.40
codegen_flags: <defaults>
</compile_context>

<pallas_src>
import jax
import jax.numpy as jnp
from jax import lax
from jax.experimental import pallas as pl
from jax.experimental.pallas import tpu as pltpu


def _round_up(v, m):
    return ((v + m - 1) // m) * m


def _ista_kernel(gam_ref, xsi_ref, h_ref, x_ref, y_ref, out_ref):
    """Runs all unrolled ISTA layers for one batch tile.

    gam_ref, xsi_ref : SMEM (L,) float32 scalar-prefetch refs (per-layer params)
    h_ref  : VMEM (Mp, Np)  padded measurement matrix (resident across grid steps)
    x_ref  : VMEM (TB, Np)  batch tile of initial estimates
    y_ref  : VMEM (TB, Mp)  batch tile of measurements
    out_ref: VMEM (TB, Np)  batch tile of final estimates
    """
    H = h_ref[...]            # (Mp, Np)
    Ht = H.T                  # hoisted: one XLU transpose per grid step, not per layer
    y = y_ref[...]            # (TB, Mp)
    x = x_ref[...]            # (TB, Np)

    num_layers = gam_ref.shape[0]
    # Static unroll over layers: small fixed trip count -> full LLO visibility,
    # static SMEM scalar reads, adjacent-layer MXU push/pop can overlap.
    for i in range(num_layers):
        gamma = gam_ref[i]
        thr = gamma * xsi_ref[i]
        r = jnp.dot(x, Ht, preferred_element_type=jnp.float32) - y      # (TB, Mp)
        grad = jnp.dot(r, H, preferred_element_type=jnp.float32)        # (TB, Np)
        z = x - gamma * grad
        # soft-threshold: z - clip(z, -thr, thr)  ==  sign(z) * max(|z| - thr, 0)
        x = z - jnp.clip(z, -thr, thr)

    out_ref[...] = x


def ista_forward(H, x0, y, x_true, gammas, xsis, *, batch_tile=512):
    """Pallas implementation of ISTA_model.forward(H, x0, y, x_true).

    x_true is accepted for signature parity with the PyTorch module but unused
    (the PyTorch forward ignores it too).
    """
    del x_true
    M, N = H.shape
    B = x0.shape[0]
    assert x0.shape == (B, N)
    assert y.shape == (B, M)

    f32 = jnp.float32
    H = H.astype(f32)
    x0 = x0.astype(f32)
    y = y.astype(f32)
    gammas = gammas.astype(f32)
    xsis = xsis.astype(f32)

    # Lane-dense padding: M, N -> multiples of 128; B -> multiple of 8 (sublanes)
    # and of the batch tile. Zero padding is preserved exactly by the ISTA update.
    Mp = _round_up(M, 128)
    Np = _round_up(N, 128)
    Bp = _round_up(B, 8)
    TB = min(batch_tile, Bp)
    Bp = _round_up(Bp, TB)

    Hp = jnp.zeros((Mp, Np), f32).at[:M, :N].set(H)
    xp = jnp.zeros((Bp, Np), f32).at[:B, :N].set(x0)
    yp = jnp.zeros((Bp, Mp), f32).at[:B, :M].set(y)

    grid = (Bp // TB,)

    grid_spec = pltpu.PrefetchScalarGridSpec(
        num_scalar_prefetch=2,          # gammas, xsis land in SMEM
        grid=grid,
        in_specs=[
            pl.BlockSpec((Mp, Np), lambda i, g, s: (0, 0)),   # H: resident in VMEM
            pl.BlockSpec((TB, Np), lambda i, g, s: (i, 0)),   # x0 batch tile
            pl.BlockSpec((TB, Mp), lambda i, g, s: (i, 0)),   # y batch tile
        ],
        out_specs=pl.BlockSpec((TB, Np), lambda i, g, s: (i, 0)),
    )

    out_padded = pl.pallas_call(
        _ista_kernel,
        out_shape=jax.ShapeDtypeStruct((Bp, Np), f32),
        grid_spec=grid_spec,
        compiler_params=pltpu.CompilerParams(
            dimension_semantics=("parallel",)),   # batch tiles are independent
    )(gammas, xsis, Hp, xp, yp)

    return out_padded[:B, :N]


if __name__ == "__main__":
    key = jax.random.PRNGKey(0)
    k_h, k_x, k_y, k_xt = jax.random.split(key, 4)

    # Small ISTA problem: B batch items, N-dim sparse signal, M measurements.
    # (For real workloads, batch many independent ISTA problems along B —
    #  the kernel tiles B across a parallel grid axis.)
    B, M, N = 8, 16, 32
    num_layers = 4

    H = jax.random.normal(k_h, (M, N), dtype=jnp.float32) / jnp.sqrt(M)
    x0 = jnp.zeros((B, N), dtype=jnp.float32)
    y = jax.random.normal(k_y, (B, M), dtype=jnp.float32)
    x_true = jax.random.normal(k_xt, (B, N), dtype=jnp.float32)  # unused by forward

    # Deterministic per-layer stepsize / regularization parameters
    # (stand-ins for stepsize_regularization_arch()'s learnable scalars).
    gammas = jnp.full((num_layers,), 0.05, dtype=jnp.float32)
    xsis = jnp.full((num_layers,), 0.10, dtype=jnp.float32)

    out = ista_forward(H, x0, y, x_true, gammas, xsis)
    out = jax.block_until_ready(out)

    # Pure-JAX reference check of the unrolled ISTA iterations.
    def ref_forward(H, x, y, gammas, xsis):
        for i in range(num_layers):
            r = x @ H.T - y
            grad = r @ H
            z = x - gammas[i] * grad
            thr = gammas[i] * xsis[i]
            x = jnp.sign(z) * jnp.maximum(jnp.abs(z) - thr, 0.0)
        return x

    ref = ref_forward(H, x0, y, gammas, xsis)
    assert out.shape == (B, N)
    assert jnp.allclose(out, ref, atol=1e-5, rtol=1e-5)

    print("KERNEL_OK")
</pallas_src>

<mosaic_0001>
module attributes {stable_mosaic.version = 11 : i64} {
  func.func @_ista_kernel(%arg0: i32, %arg1: memref<4xf32, #tpu.memory_space<smem>>, %arg2: memref<4xf32, #tpu.memory_space<smem>>, %arg3: memref<128x128xf32, #tpu.memory_space<vmem>>, %arg4: memref<8x128xf32, #tpu.memory_space<vmem>>, %arg5: memref<8x128xf32, #tpu.memory_space<vmem>>, %arg6: memref<8x128xf32, #tpu.memory_space<vmem>>) attributes {dimension_semantics = [#tpu.dimension_semantics<parallel>], iteration_bounds = array<i64: 1>, scalar_prefetch = 2 : i64, scratch_operands = 0 : i64, tpu.core_type = #tpu.core_type<tc>, window_params = [{pipeline_mode = #tpu.pipeline_mode<synchronous>, transform_indices = @transform_0, window_bounds = array<i64: 128, 128>}, {transform_indices = @transform_1, window_bounds = array<i64: 8, 128>}, {transform_indices = @transform_2, window_bounds = array<i64: 8, 128>}, {transform_indices = @transform_3, window_bounds = array<i64: 8, 128>}]} {
    %c0 = arith.constant 0 : index
    %c0_0 = arith.constant 0 : index
    %0 = vector.load %arg3[%c0, %c0_0] : memref<128x128xf32, #tpu.memory_space<vmem>>, vector<128x128xf32>
    %1 = tpu.transpose %0, [1, 0] : vector<128x128xf32> -> vector<128x128xf32>
    %c0_1 = arith.constant 0 : index
    %c0_2 = arith.constant 0 : index
    %2 = vector.load %arg5[%c0_1, %c0_2] : memref<8x128xf32, #tpu.memory_space<vmem>>, vector<8x128xf32>
    %c0_3 = arith.constant 0 : index
    %c0_4 = arith.constant 0 : index
    %3 = vector.load %arg4[%c0_3, %c0_4] : memref<8x128xf32, #tpu.memory_space<vmem>>, vector<8x128xf32>
    %c0_5 = arith.constant 0 : index
    %4 = memref.load %arg1[%c0_5] : memref<4xf32, #tpu.memory_space<smem>>
    %c0_6 = arith.constant 0 : index
    %5 = memref.load %arg2[%c0_6] : memref<4xf32, #tpu.memory_space<smem>>
    %6 = arith.mulf %4, %5 : f32
    %cst = arith.constant dense<0.000000e+00> : vector<8x128xf32>
    %7 = tpu.matmul %3, %1, %cst {dimension_numbers = #tpu.dot_dimension_numbers<[1], [0], [0], [1], [0, 0, 1, 1], [], []>} : vector<8x128xf32>, vector<128x128xf32>, vector<8x128xf32> -> vector<8x128xf32>
    %8 = arith.subf %7, %2 : vector<8x128xf32>
    %cst_7 = arith.constant dense<0.000000e+00> : vector<8x128xf32>
    %9 = tpu.matmul %8, %0, %cst_7 {dimension_numbers = #tpu.dot_dimension_numbers<[1], [0], [0], [1], [0, 0, 1, 1], [], []>} : vector<8x128xf32>, vector<128x128xf32>, vector<8x128xf32> -> vector<8x128xf32>
    %10 = vector.broadcast %4 : f32 to vector<8x128xf32>
    %11 = arith.mulf %10, %9 : vector<8x128xf32>
    %12 = arith.subf %3, %11 : vector<8x128xf32>
    %cst_8 = arith.constant 0.000000e+00 : f32
    %13 = arith.subf %cst_8, %6 : f32
    %14 = vector.broadcast %13 : f32 to vector<8x128xf32>
    %15 = arith.maximumf %14, %12 : vector<8x128xf32>
    %16 = vector.broadcast %6 : f32 to vector<8x128xf32>
    %17 = arith.minimumf %16, %15 : vector<8x128xf32>
    %18 = arith.subf %12, %17 : vector<8x128xf32>
    %c1 = arith.constant 1 : index
    %19 = memref.load %arg1[%c1] : memref<4xf32, #tpu.memory_space<smem>>
    %c1_9 = arith.constant 1 : index
    %20 = memref.load %arg2[%c1_9] : memref<4xf32, #tpu.memory_space<smem>>
    %21 = arith.mulf %19, %20 : f32
    %cst_10 = arith.constant dense<0.000000e+00> : vector<8x128xf32>
    %22 = tpu.matmul %18, %1, %cst_10 {dimension_numbers = #tpu.dot_dimension_numbers<[1], [0], [0], [1], [0, 0, 1, 1], [], []>} : vector<8x128xf32>, vector<128x128xf32>, vector<8x128xf32> -> vector<8x128xf32>
    %23 = arith.subf %22, %2 : vector<8x128xf32>
    %cst_11 = arith.constant dense<0.000000e+00> : vector<8x128xf32>
    %24 = tpu.matmul %23, %0, %cst_11 {dimension_numbers = #tpu.dot_dimension_numbers<[1], [0], [0], [1], [0, 0, 1, 1], [], []>} : vector<8x128xf32>, vector<128x128xf32>, vector<8x128xf32> -> vector<8x128xf32>
    %25 = vector.broadcast %19 : f32 to vector<8x128xf32>
    %26 = arith.mulf %25, %24 : vector<8x128xf32>
    %27 = arith.subf %18, %26 : vector<8x128xf32>
    %cst_12 = arith.constant 0.000000e+00 : f32
    %28 = arith.subf %cst_12, %21 : f32
    %29 = vector.broadcast %28 : f32 to vector<8x128xf32>
    %30 = arith.maximumf %29, %27 : vector<8x128xf32>
    %31 = vector.broadcast %21 : f32 to vector<8x128xf32>
    %32 = arith.minimumf %31, %30 : vector<8x128xf32>
    %33 = arith.subf %27, %32 : vector<8x128xf32>
    %c2 = arith.constant 2 : index
    %34 = memref.load %arg1[%c2] : memref<4xf32, #tpu.memory_space<smem>>
    %c2_13 = arith.constant 2 : index
    %35 = memref.load %arg2[%c2_13] : memref<4xf32, #tpu.memory_space<smem>>
    %36 = arith.mulf %34, %35 : f32
    %cst_14 = arith.constant dense<0.000000e+00> : vector<8x128xf32>
    %37 = tpu.matmul %33, %1, %cst_14 {dimension_numbers = #tpu.dot_dimension_numbers<[1], [0], [0], [1], [0, 0, 1, 1], [], []>} : vector<8x128xf32>, vector<128x128xf32>, vector<8x128xf32> -> vector<8x128xf32>
    %38 = arith.subf %37, %2 : vector<8x128xf32>
    %cst_15 = arith.constant dense<0.000000e+00> : vector<8x128xf32>
    %39 = tpu.matmul %38, %0, %cst_15 {dimension_numbers = #tpu.dot_dimension_numbers<[1], [0], [0], [1], [0, 0, 1, 1], [], []>} : vector<8x128xf32>, vector<128x128xf32>, vector<8x128xf32> -> vector<8x128xf32>
    %40 = vector.broadcast %34 : f32 to vector<8x128xf32>
    %41 = arith.mulf %40, %39 : vector<8x128xf32>
    %42 = arith.subf %33, %41 : vector<8x128xf32>
    %cst_16 = arith.constant 0.000000e+00 : f32
    %43 = arith.subf %cst_16, %36 : f32
    %44 = vector.broadcast %43 : f32 to vector<8x128xf32>
    %45 = arith.maximumf %44, %42 : vector<8x128xf32>
    %46 = vector.broadcast %36 : f32 to vector<8x128xf32>
    %47 = arith.minimumf %46, %45 : vector<8x128xf32>
    %48 = arith.subf %42, %47 : vector<8x128xf32>
    %c3 = arith.constant 3 : index
    %49 = memref.load %arg1[%c3] : memref<4xf32, #tpu.memory_space<smem>>
    %c3_17 = arith.constant 3 : index
    %50 = memref.load %arg2[%c3_17] : memref<4xf32, #tpu.memory_space<smem>>
    %51 = arith.mulf %49, %50 : f32
    %cst_18 = arith.constant dense<0.000000e+00> : vector<8x128xf32>
    %52 = tpu.matmul %48, %1, %cst_18 {dimension_numbers = #tpu.dot_dimension_numbers<[1], [0], [0], [1], [0, 0, 1, 1], [], []>} : vector<8x128xf32>, vector<128x128xf32>, vector<8x128xf32> -> vector<8x128xf32>
    %53 = arith.subf %52, %2 : vector<8x128xf32>
    %cst_19 = arith.constant dense<0.000000e+00> : vector<8x128xf32>
    %54 = tpu.matmul %53, %0, %cst_19 {dimension_numbers = #tpu.dot_dimension_numbers<[1], [0], [0], [1], [0, 0, 1, 1], [], []>} : vector<8x128xf32>, vector<128x128xf32>, vector<8x128xf32> -> vector<8x128xf32>
    %55 = vector.broadcast %49 : f32 to vector<8x128xf32>
    %56 = arith.mulf %55, %54 : vector<8x128xf32>
    %57 = arith.subf %48, %56 : vector<8x128xf32>
    %cst_20 = arith.constant 0.000000e+00 : f32
    %58 = arith.subf %cst_20, %51 : f32
    %59 = vector.broadcast %58 : f32 to vector<8x128xf32>
    %60 = arith.maximumf %59, %57 : vector<8x128xf32>
    %61 = vector.broadcast %51 : f32 to vector<8x128xf32>
    %62 = arith.minimumf %61, %60 : vector<8x128xf32>
    %63 = arith.subf %57, %62 : vector<8x128xf32>
    %c0_21 = arith.constant 0 : index
    %c0_22 = arith.constant 0 : index
    %64 = vector.load %arg6[%c0_21, %c0_22] : memref<8x128xf32, #tpu.memory_space<vmem>>, vector<8x128xf32>
    tpu.vector_store %arg6[%c0_21, %c0_22], %63 {strides = array<i32>} : memref<8x128xf32, #tpu.memory_space<vmem>>, vector<8x128xf32>,
    return
  }
  func.func @transform_0(%arg0: i32, %arg1: memref<4xf32, #tpu.memory_space<smem>>, %arg2: memref<4xf32, #tpu.memory_space<smem>>) -> (i32, i32) {
    %c0_i32 = arith.constant 0 : i32
    %c0_i32_0 = arith.constant 0 : i32
    %c0_i32_1 = arith.constant 0 : i32
    return %c0_i32, %c0_i32_0 : i32, i32
  }
  func.func @transform_1(%arg0: i32, %arg1: memref<4xf32, #tpu.memory_space<smem>>, %arg2: memref<4xf32, #tpu.memory_space<smem>>) -> (i32, i32) {
    %c0_i32 = arith.constant 0 : i32
    %c0_i32_0 = arith.constant 0 : i32
    return %arg0, %c0_i32 : i32, i32
  }
  func.func @transform_2(%arg0: i32, %arg1: memref<4xf32, #tpu.memory_space<smem>>, %arg2: memref<4xf32, #tpu.memory_space<smem>>) -> (i32, i32) {
    %c0_i32 = arith.constant 0 : i32
    %c0_i32_0 = arith.constant 0 : i32
    return %arg0, %c0_i32 : i32, i32
  }
  func.func @transform_3(%arg0: i32, %arg1: memref<4xf32, #tpu.memory_space<smem>>, %arg2: memref<4xf32, #tpu.memory_space<smem>>) -> (i32, i32) {
    %c0_i32 = arith.constant 0 : i32
    %c0_i32_0 = arith.constant 0 : i32
    return %arg0, %c0_i32 : i32, i32
  }
}

</mosaic_0001>

<llo_original>
// kernel: tpu_custom_call.1
$region0: #{tpu_custom_call.1}
  #allocation0 [shape = 'u32[]', space=smem, size = 0x4, offset = 0x4, fixed_abs, tag = 'smem constant byte address 0x4 - core index']
  #allocation1 [shape = 'u32[144,128]{1,0:T(1,128)}', space=vmem, size = 0x12000, scoped, tag = 'internal scratch']
  #allocation2 [shape = 's32[1]{0}', space=sflag, size = 0x4, scoped, tag = 'scoped memory for tpu_custom_call.1']
  #allocation3 [shape = 'u8[512]{0}', space=smem, size = 0x200, scoped, tag = 'prefetched SMEM operand 0']
  #allocation4 [shape = 'u8[512]{0}', space=smem, size = 0x200, scoped, tag = 'prefetched SMEM operand 1']
  %s0 = inlined_call_operand.hbm [shape: f32[4], index: 0, kind: input, shape index: {}]
  %s1 = inlined_call_operand.vmem [shape: f32[4], index: 1, kind: input, shape index: {}]
  %s2 = inlined_call_operand.hbm [shape: f32[128,128], index: 2, kind: input, shape index: {}]
  %s3 = inlined_call_operand.vmem [shape: f32[8,128], index: 3, kind: input, shape index: {}]
  %s4 = inlined_call_operand.hbm [shape: f32[8,128], index: 4, kind: input, shape index: {}]
  %s5 = inlined_call_operand.hbm [shape: f32[8,128], index: 5, kind: output, shape index: {}]
  %s6 = sld [smem:[#allocation0]]
  $region30: #{tpu_custom_call.1} parent=0
    _
  %s8 = ssub.s32 1, %s6
  %s9 = scalar_select 0, %s8, %s6
  %11 = dma.hbm_to_smem %s0, 16, [#allocation3], [#allocation2]
  %s12 = sshll.u32 %s1, 4
  %s13 = int_to_ptr.vmem [resolvable:$true] %s12
  %15 = dma.vmem_to_smem %s13, 16, [#allocation4], [#allocation2]
  %16 = dma.done [#allocation2], 32
  %17 = sfence
  $region1: #{tpu_custom_call.1} parent=0
    #allocation5 [shape = 'u8[65536]{0}', space=vmem, size = 0x10000, scoped, tag = 'input window, operand 2, single buffered']
    #allocation6 [shape = 's32[1]{0}', space=sflag, size = 0x4, scoped, tag = 'scoped memory for tpu_custom_call.1']
    #allocation7 [shape = 's32[1]{0}', space=sflag, size = 0x4, scoped, tag = 'scoped memory for tpu_custom_call.1']
    #allocation8 [shape = 'u8[4096]{0}', space=vmem, size = 0x1000, scoped, tag = 'input window, operand 4, single buffered']
    #allocation9 [shape = 's32[1]{0}', space=sflag, size = 0x4, scoped, tag = 'scoped memory for tpu_custom_call.1']
    #allocation10 [shape = 'u8[4096]{0}', space=vmem, size = 0x1000, scoped, tag = 'output window, operand 0, single buffered']
    %18 = vsyncpa [#allocation6], 0
    %19 = vsyncpa [#allocation9], 0
    %20 = vsyncpa [#allocation7], 0
    // Predicated region
    $region2: #{tpu_custom_call.1} parent=1 // pred_check
      _
    $region3: #{tpu_custom_call.1} parent=1 // pred_check_branch
      %22 = sbr.rel (0) target = $region5
    $region4: #{tpu_custom_call.1} parent=1 // pred_region
      %s24 = ssub.s32 2048, 2048
      %25 = vsyncadd [#allocation6], %s24
      %s26 = sshll.u32 [#allocation5], 4
      %s27 = int_to_ptr.vmem [resolvable:$true] %s26
      %32 = dma.hbm_to_vmem [thread:$0]  %s2, 2048, %s27, [#allocation6], 128, 128, 8
    $region5: #{tpu_custom_call.1} parent=1 // pred_fallthru
      _
    // Predicated region
    $region6: #{tpu_custom_call.1} parent=1 // pred_check
      _
    $region7: #{tpu_custom_call.1} parent=1 // pred_check_branch
      %34 = sbr.rel (0) target = $region9
    $region8: #{tpu_custom_call.1} parent=1 // pred_region
      _
    $region9: #{tpu_custom_call.1} parent=1 // pred_fallthru
      _
    // Predicated region
    $region10: #{tpu_custom_call.1} parent=1 // pred_check
      _
    $region11: #{tpu_custom_call.1} parent=1 // pred_check_branch
      %36 = sbr.rel (0) target = $region13
    $region12: #{tpu_custom_call.1} parent=1 // pred_region
      %s38 = ssub.s32 128, 128
      %39 = vsyncadd [#allocation9], %s38
      %s41 = sshll.u32 [#allocation8], 4
      %s42 = int_to_ptr.vmem [resolvable:$true] %s41
      %44 = dma.hbm_to_vmem [thread:$0]  %s4, 128, %s42, [#allocation9]
    $region13: #{tpu_custom_call.1} parent=1 // pred_fallthru
      _
    // Predicated region
    $region14: #{tpu_custom_call.1} parent=1 // pred_check
      _
    $region15: #{tpu_custom_call.1} parent=1 // pred_check_branch
      %46 = sbr.rel (0) target = $region17
    $region16: #{tpu_custom_call.1} parent=1 // pred_region
      %47 = dma.done [#allocation6], 2048
    $region17: #{tpu_custom_call.1} parent=1 // pred_fallthru
      _
    // Predicated region
    $region18: #{tpu_custom_call.1} parent=1 // pred_check
      _
    $region19: #{tpu_custom_call.1} parent=1 // pred_check_branch
      %49 = sbr.rel (0) target = $region21
    $region20: #{tpu_custom_call.1} parent=1 // pred_region
      %50 = dma.done [#allocation9], 128
    $region21: #{tpu_custom_call.1} parent=1 // pred_fallthru
      _
    %v51 = vld [vmem:[#allocation5] sm:$0xff]
    %v52 = vld [vmem:[#allocation5 + $0x8] sm:$0xff]
    %v53 = vld [vmem:[#allocation5 + $0x10] sm:$0xff]
    %v54 = vld [vmem:[#allocation5 + $0x18] sm:$0xff]
    %v55 = vld [vmem:[#allocation5 + $0x20] sm:$0xff]
    %v56 = vld [vmem:[#allocation5 + $0x28] sm:$0xff]
    %v57 = vld [vmem:[#allocation5 + $0x30] sm:$0xff]
    %v58 = vld [vmem:[#allocation5 + $0x38] sm:$0xff]
    %v59 = vld [vmem:[#allocation5 + $0x40] sm:$0xff]
    %v60 = vld [vmem:[#allocation5 + $0x48] sm:$0xff]
    %v61 = vld [vmem:[#allocation5 + $0x50] sm:$0xff]
    %v62 = vld [vmem:[#allocation5 + $0x58] sm:$0xff]
    %v63 = vld [vmem:[#allocation5 + $0x60] sm:$0xff]
    %v64 = vld [vmem:[#allocation5 + $0x68] sm:$0xff]
    %v65 = vld [vmem:[#allocation5 + $0x70] sm:$0xff]
    %v66 = vld [vmem:[#allocation5 + $0x78] sm:$0xff]
    %v67 = vld [vmem:[#allocation8] sm:$0xff]
    %v68 = vld [vmem:[%s3] sm:$0xff]
    %s69 = sld [smem:[#allocation3]]
    %s70 = sld [smem:[#allocation4]]
    %s71 = smul.f32 %s69, %s70
    %72 = vmatprep.subr.mxu0 0.0
    %73 = vmatpush1.xpose.msra.mxu0 %v51
    %74 = vmatprep.subr.mxu0 0.0
    %75 = vmatpush1.xpose.msra.mxu0 %v52
    %76 = vmatprep.subr.mxu0 0.0
    %77 = vmatpush1.xpose.msra.mxu0 %v53
    %78 = vmatprep.subr.mxu0 0.0
    %79 = vmatpush1.xpose.msra.mxu0 %v54
    %80 = vmatprep.subr.mxu0 0.0
    %81 = vmatpush1.xpose.msra.mxu0 %v55
    %82 = vmatprep.subr.mxu0 0.0
    %83 = vmatpush1.xpose.msra.mxu0 %v56
    %84 = vmatprep.subr.mxu0 0.0
    %85 = vmatpush1.xpose.msra.mxu0 %v57
    %86 = vmatprep.subr.mxu0 0.0
    %87 = vmatpush1.xpose.msra.mxu0 %v58
    %88 = vmatprep.subr.mxu0 0.0
    %89 = vmatpush1.xpose.msra.mxu0 %v59
    %90 = vmatprep.subr.mxu0 0.0
    %91 = vmatpush1.xpose.msra.mxu0 %v60
    %92 = vmatprep.subr.mxu0 0.0
    %93 = vmatpush1.xpose.msra.mxu0 %v61
    %94 = vmatprep.subr.mxu0 0.0
    %95 = vmatpush1.xpose.msra.mxu0 %v62
    %96 = vmatprep.subr.mxu0 0.0
    %97 = vmatpush1.xpose.msra.mxu0 %v63
    %98 = vmatprep.subr.mxu0 0.0
    %99 = vmatpush1.xpose.msra.mxu0 %v64
    %100 = vmatprep.subr.mxu0 0.0
    %101 = vmatpush1.xpose.msra.mxu0 %v65
    %102 = vmatprep.subr.mxu0 0.0
    %103 = vmatpush1.xpose.msra.mxu0 %v66
    %104 = vmatprep.subr.mxu0 0.0
    %105 = vmatpush1.xpose.msra.mxu0 0.0
    %106 = vmatprep.subr.mxu0 0.0
    %107 = vmatpush1.xpose.msra.mxu0 0.0
    %108 = vmatprep.subr.mxu0 0.0
    %109 = vmatpush1.xpose.msra.mxu0 0.0
    %110 = vmatprep.subr.mxu0 0.0
    %111 = vmatpush1.xpose.msra.mxu0 0.0
    %112 = vmatprep.subr.mxu0 0.0
    %113 = vmatpush1.xpose.msra.mxu0 0.0
    %114 = vmatprep.subr.mxu0 0.0
    %115 = vmatpush1.xpose.msra.mxu0 0.0
    %116 = vmatprep.subr.mxu0 0.0
    %117 = vmatpush1.xpose.msra.mxu0 0.0
    %118 = vmatprep.subr.mxu0 0.0
    %119 = vmatpush1.xpose.msra.mxu0 0.0
    %120 = vmatprep.subr.mxu0 0.0
    %121 = vmatpush1.xpose.msra.mxu0 0.0
    %122 = vmatprep.subr.mxu0 0.0
    %123 = vmatpush1.xpose.msra.mxu0 0.0
    %124 = vmatprep.subr.mxu0 0.0
    %125 = vmatpush1.xpose.msra.mxu0 0.0
    %126 = vmatprep.subr.mxu0 0.0
    %127 = vmatpush1.xpose.msra.mxu0 0.0
    %128 = vmatprep.subr.mxu0 0.0
    %129 = vmatpush1.xpose.msra.mxu0 0.0
    %130 = vmatprep.subr.mxu0 0.0
    %131 = vmatpush1.xpose.msra.mxu0 0.0
    %132 = vmatprep.subr.mxu0 0.0
    %133 = vmatpush1.xpose.msra.mxu0 0.0
    %134 = vmatprep.subr.mxu0 0.0
    %135 = vmatpush1.xpose.msra.mxu0 0.0
    %136 = vmatprep.mubr.f32.mxu0 0.0
    %137 = vmatmul.mubr.f32.gmra.mrb[0].mxu0 %v68
    %v138 = vpop.f32.mrb[0].mxu0
    %v139 = vadd.f32 0.0, %v138
    %v140 = vpop.f32.mrb[0].mxu0
    %141 = vdwg.mxu0
    %v142 = vsub.f32 %v139, %v67
    %143 = vmatprep.subr.mxu0 0.0
    %144 = vmatpush1.msra.mxu0 %v51
    %145 = vmatprep.subr.mxu0 0.0
    %146 = vmatpush1.msra.mxu0 %v52
    %147 = vmatprep.subr.mxu0 0.0
    %148 = vmatpush1.msra.mxu0 %v53
    %149 = vmatprep.subr.mxu0 0.0
    %150 = vmatpush1.msra.mxu0 %v54
    %151 = vmatprep.subr.mxu0 0.0
    %152 = vmatpush1.msra.mxu0 %v55
    %153 = vmatprep.subr.mxu0 0.0
    %154 = vmatpush1.msra.mxu0 %v56
    %155 = vmatprep.subr.mxu0 0.0
    %156 = vmatpush1.msra.mxu0 %v57
    %157 = vmatprep.subr.mxu0 0.0
    %158 = vmatpush1.msra.mxu0 %v58
    %159 = vmatprep.subr.mxu0 0.0
    %160 = vmatpush1.msra.mxu0 %v59
    %161 = vmatprep.subr.mxu0 0.0
    %162 = vmatpush1.msra.mxu0 %v60
    %163 = vmatprep.subr.mxu0 0.0
    %164 = vmatpush1.msra.mxu0 %v61
    %165 = vmatprep.subr.mxu0 0.0
    %166 = vmatpush1.msra.mxu0 %v62
    %167 = vmatprep.subr.mxu0 0.0
    %168 = vmatpush1.msra.mxu0 %v63
    %169 = vmatprep.subr.mxu0 0.0
    %170 = vmatpush1.msra.mxu0 %v64
    %171 = vmatprep.subr.mxu0 0.0
    %172 = vmatpush1.msra.mxu0 %v65
    %173 = vmatprep.subr.mxu0 0.0
    %174 = vmatpush1.msra.mxu0 %v66
    %175 = vmatprep.subr.mxu0 0.0
    %176 = vmatpush1.msra.mxu0 0.0
    %177 = vmatprep.subr.mxu0 0.0
    %178 = vmatpush1.msra.mxu0 0.0
    %179 = vmatprep.subr.mxu0 0.0
    %180 = vmatpush1.msra.mxu0 0.0
    %181 = vmatprep.subr.mxu0 0.0
    %182 = vmatpush1.msra.mxu0 0.0
    %183 = vmatprep.subr.mxu0 0.0
    %184 = vmatpush1.msra.mxu0 0.0
    %185 = vmatprep.subr.mxu0 0.0
    %186 = vmatpush1.msra.mxu0 0.0
    %187 = vmatprep.subr.mxu0 0.0
    %188 = vmatpush1.msra.mxu0 0.0
    %189 = vmatprep.subr.mxu0 0.0
    %190 = vmatpush1.msra.mxu0 0.0
    %191 = vmatprep.subr.mxu0 0.0
    %192 = vmatpush1.msra.mxu0 0.0
    %193 = vmatprep.subr.mxu0 0.0
    %194 = vmatpush1.msra.mxu0 0.0
    %195 = vmatprep.subr.mxu0 0.0
    %196 = vmatpush1.msra.mxu0 0.0
    %197 = vmatprep.subr.mxu0 0.0
    %198 = vmatpush1.msra.mxu0 0.0
    %199 = vmatprep.subr.mxu0 0.0
    %200 = vmatpush1.msra.mxu0 0.0
    %201 = vmatprep.subr.mxu0 0.0
    %202 = vmatpush1.msra.mxu0 0.0
    %203 = vmatprep.subr.mxu0 0.0
    %204 = vmatpush1.msra.mxu0 0.0
    %205 = vmatprep.subr.mxu0 0.0
    %206 = vmatpush1.msra.mxu0 0.0
    %207 = vmatprep.mubr.f32.mxu0 0.0
    %208 = vmatmul.mubr.f32.gmra.mrb[0].mxu0 %v142
    %v209 = vpop.f32.mrb[0].mxu0
    %v210 = vadd.f32 0.0, %v209
    %v211 = vpop.f32.mrb[0].mxu0
    %212 = vdwg.mxu0
    %v213 = vstv %s69
    %v214 = vmul.f32 %v213, %v210
    %v215 = vsub.f32 %v68, %v214
    %s216 = ssub.f32 0.0, %s71
    %v217 = vstv %s216
    %v218 = vmax.f32 %v217, %v215
    %v219 = vstv %s71
    %v220 = vmin.f32 %v219, %v218
    %v221 = vsub.f32 %v215, %v220
    %s222 = sld [smem:[#allocation3 + $0x1]]
    %s223 = sld [smem:[#allocation4 + $0x1]]
    %s224 = smul.f32 %s222, %s223
    %225 = vmatprep.subr.mxu0 0.0
    %226 = vmatpush1.xpose.msra.mxu0 %v51
    %227 = vmatprep.subr.mxu0 0.0
    %228 = vmatpush1.xpose.msra.mxu0 %v52
    %229 = vmatprep.subr.mxu0 0.0
    %230 = vmatpush1.xpose.msra.mxu0 %v53
    %231 = vmatprep.subr.mxu0 0.0
    %232 = vmatpush1.xpose.msra.mxu0 %v54
    %233 = vmatprep.subr.mxu0 0.0
    %234 = vmatpush1.xpose.msra.mxu0 %v55
    %235 = vmatprep.subr.mxu0 0.0
    %236 = vmatpush1.xpose.msra.mxu0 %v56
    %237 = vmatprep.subr.mxu0 0.0
    %238 = vmatpush1.xpose.msra.mxu0 %v57
    %239 = vmatprep.subr.mxu0 0.0
    %240 = vmatpush1.xpose.msra.mxu0 %v58
    %241 = vmatprep.subr.mxu0 0.0
    %242 = vmatpush1.xpose.msra.mxu0 %v59
    %243 = vmatprep.subr.mxu0 0.0
    %244 = vmatpush1.xpose.msra.mxu0 %v60
    %245 = vmatprep.subr.mxu0 0.0
    %246 = vmatpush1.xpose.msra.mxu0 %v61
    %247 = vmatprep.subr.mxu0 0.0
    %248 = vmatpush1.xpose.msra.mxu0 %v62
    %249 = vmatprep.subr.mxu0 0.0
    %250 = vmatpush1.xpose.msra.mxu0 %v63
    %251 = vmatprep.subr.mxu0 0.0
    %252 = vmatpush1.xpose.msra.mxu0 %v64
    %253 = vmatprep.subr.mxu0 0.0
    %254 = vmatpush1.xpose.msra.mxu0 %v65
    %255 = vmatprep.subr.mxu0 0.0
    %256 = vmatpush1.xpose.msra.mxu0 %v66
    %257 = vmatprep.subr.mxu0 0.0
    %258 = vmatpush1.xpose.msra.mxu0 0.0
    %259 = vmatprep.subr.mxu0 0.0
    %260 = vmatpush1.xpose.msra.mxu0 0.0
    %261 = vmatprep.subr.mxu0 0.0
    %262 = vmatpush1.xpose.msra.mxu0 0.0
    %263 = vmatprep.subr.mxu0 0.0
    %264 = vmatpush1.xpose.msra.mxu0 0.0
    %265 = vmatprep.subr.mxu0 0.0
    %266 = vmatpush1.xpose.msra.mxu0 0.0
    %267 = vmatprep.subr.mxu0 0.0
    %268 = vmatpush1.xpose.msra.mxu0 0.0
    %269 = vmatprep.subr.mxu0 0.0
    %270 = vmatpush1.xpose.msra.mxu0 0.0
    %271 = vmatprep.subr.mxu0 0.0
    %272 = vmatpush1.xpose.msra.mxu0 0.0
    %273 = vmatprep.subr.mxu0 0.0
    %274 = vmatpush1.xpose.msra.mxu0 0.0
    %275 = vmatprep.subr.mxu0 0.0
    %276 = vmatpush1.xpose.msra.mxu0 0.0
    %277 = vmatprep.subr.mxu0 0.0
    %278 = vmatpush1.xpose.msra.mxu0 0.0
    %279 = vmatprep.subr.mxu0 0.0
    %280 = vmatpush1.xpose.msra.mxu0 0.0
    %281 = vmatprep.subr.mxu0 0.0
    %282 = vmatpush1.xpose.msra.mxu0 0.0
    %283 = vmatprep.subr.mxu0 0.0
    %284 = vmatpush1.xpose.msra.mxu0 0.0
    %285 = vmatprep.subr.mxu0 0.0
    %286 = vmatpush1.xpose.msra.mxu0 0.0
    %287 = vmatprep.subr.mxu0 0.0
    %288 = vmatpush1.xpose.msra.mxu0 0.0
    %289 = vmatprep.mubr.f32.mxu0 0.0
    %290 = vmatmul.mubr.f32.gmra.mrb[0].mxu0 %v221
    %v291 = vpop.f32.mrb[0].mxu0
    %v292 = vadd.f32 0.0, %v291
    %v293 = vpop.f32.mrb[0].mxu0
    %294 = vdwg.mxu0
    %v295 = vsub.f32 %v292, %v67
    %296 = vmatprep.subr.mxu0 0.0
    %297 = vmatpush1.msra.mxu0 %v51
    %298 = vmatprep.subr.mxu0 0.0
    %299 = vmatpush1.msra.mxu0 %v52
    %300 = vmatprep.subr.mxu0 0.0
    %301 = vmatpush1.msra.mxu0 %v53
    %302 = vmatprep.subr.mxu0 0.0
    %303 = vmatpush1.msra.mxu0 %v54
    %304 = vmatprep.subr.mxu0 0.0
    %305 = vmatpush1.msra.mxu0 %v55
    %306 = vmatprep.subr.mxu0 0.0
    %307 = vmatpush1.msra.mxu0 %v56
    %308 = vmatprep.subr.mxu0 0.0
    %309 = vmatpush1.msra.mxu0 %v57
    %310 = vmatprep.subr.mxu0 0.0
    %311 = vmatpush1.msra.mxu0 %v58
    %312 = vmatprep.subr.mxu0 0.0
    %313 = vmatpush1.msra.mxu0 %v59
    %314 = vmatprep.subr.mxu0 0.0
    %315 = vmatpush1.msra.mxu0 %v60
    %316 = vmatprep.subr.mxu0 0.0
    %317 = vmatpush1.msra.mxu0 %v61
    %318 = vmatprep.subr.mxu0 0.0
    %319 = vmatpush1.msra.mxu0 %v62
    %320 = vmatprep.subr.mxu0 0.0
    %321 = vmatpush1.msra.mxu0 %v63
    %322 = vmatprep.subr.mxu0 0.0
    %323 = vmatpush1.msra.mxu0 %v64
    %324 = vmatprep.subr.mxu0 0.0
    %325 = vmatpush1.msra.mxu0 %v65
    %326 = vmatprep.subr.mxu0 0.0
    %327 = vmatpush1.msra.mxu0 %v66
    %328 = vmatprep.subr.mxu0 0.0
    %329 = vmatpush1.msra.mxu0 0.0
    %330 = vmatprep.subr.mxu0 0.0
    %331 = vmatpush1.msra.mxu0 0.0
    %332 = vmatprep.subr.mxu0 0.0
    %333 = vmatpush1.msra.mxu0 0.0
    %334 = vmatprep.subr.mxu0 0.0
    %335 = vmatpush1.msra.mxu0 0.0
    %336 = vmatprep.subr.mxu0 0.0
    %337 = vmatpush1.msra.mxu0 0.0
    %338 = vmatprep.subr.mxu0 0.0
    %339 = vmatpush1.msra.mxu0 0.0
    %340 = vmatprep.subr.mxu0 0.0
    %341 = vmatpush1.msra.mxu0 0.0
    %342 = vmatprep.subr.mxu0 0.0
    %343 = vmatpush1.msra.mxu0 0.0
    %344 = vmatprep.subr.mxu0 0.0
    %345 = vmatpush1.msra.mxu0 0.0
    %346 = vmatprep.subr.mxu0 0.0
    %347 = vmatpush1.msra.mxu0 0.0
    %348 = vmatprep.subr.mxu0 0.0
    %349 = vmatpush1.msra.mxu0 0.0
    %350 = vmatprep.subr.mxu0 0.0
    %351 = vmatpush1.msra.mxu0 0.0
    %352 = vmatprep.subr.mxu0 0.0
    %353 = vmatpush1.msra.mxu0 0.0
    %354 = vmatprep.subr.mxu0 0.0
    %355 = vmatpush1.msra.mxu0 0.0
    %356 = vmatprep.subr.mxu0 0.0
    %357 = vmatpush1.msra.mxu0 0.0
    %358 = vmatprep.subr.mxu0 0.0
    %359 = vmatpush1.msra.mxu0 0.0
    %360 = vmatprep.mubr.f32.mxu0 0.0
    %361 = vmatmul.mubr.f32.gmra.mrb[0].mxu0 %v295
    %v362 = vpop.f32.mrb[0].mxu0
    %v363 = vadd.f32 0.0, %v362
    %v364 = vpop.f32.mrb[0].mxu0
    %365 = vdwg.mxu0
    %v366 = vstv %s222
    %v367 = vmul.f32 %v366, %v363
    %v368 = vsub.f32 %v221, %v367
    %s369 = ssub.f32 0.0, %s224
    %v370 = vstv %s369
    %v371 = vmax.f32 %v370, %v368
    %v372 = vstv %s224
    %v373 = vmin.f32 %v372, %v371
    %v374 = vsub.f32 %v368, %v373
    %s375 = sld [smem:[#allocation3 + $0x2]]
    %s376 = sld [smem:[#allocation4 + $0x2]]
    %s377 = smul.f32 %s375, %s376
    %378 = vmatprep.subr.mxu0 0.0
    %379 = vmatpush1.xpose.msra.mxu0 %v51
    %380 = vmatprep.subr.mxu0 0.0
    %381 = vmatpush1.xpose.msra.mxu0 %v52
    %382 = vmatprep.subr.mxu0 0.0
    %383 = vmatpush1.xpose.msra.mxu0 %v53
    %384 = vmatprep.subr.mxu0 0.0
    %385 = vmatpush1.xpose.msra.mxu0 %v54
    %386 = vmatprep.subr.mxu0 0.0
    %387 = vmatpush1.xpose.msra.mxu0 %v55
    %388 = vmatprep.subr.mxu0 0.0
    %389 = vmatpush1.xpose.msra.mxu0 %v56
    %390 = vmatprep.subr.mxu0 0.0
    %391 = vmatpush1.xpose.msra.mxu0 %v57
    %392 = vmatprep.subr.mxu0 0.0
    %393 = vmatpush1.xpose.msra.mxu0 %v58
    %394 = vmatprep.subr.mxu0 0.0
    %395 = vmatpush1.xpose.msra.mxu0 %v59
    %396 = vmatprep.subr.mxu0 0.0
    %397 = vmatpush1.xpose.msra.mxu0 %v60
    %398 = vmatprep.subr.mxu0 0.0
    %399 = vmatpush1.xpose.msra.mxu0 %v61
    %400 = vmatprep.subr.mxu0 0.0
    %401 = vmatpush1.xpose.msra.mxu0 %v62
    %402 = vmatprep.subr.mxu0 0.0
    %403 = vmatpush1.xpose.msra.mxu0 %v63
    %404 = vmatprep.subr.mxu0 0.0
    %405 = vmatpush1.xpose.msra.mxu0 %v64
    %406 = vmatprep.subr.mxu0 0.0
    %407 = vmatpush1.xpose.msra.mxu0 %v65
    %408 = vmatprep.subr.mxu0 0.0
    %409 = vmatpush1.xpose.msra.mxu0 %v66
    %410 = vmatprep.subr.mxu0 0.0
    %411 = vmatpush1.xpose.msra.mxu0 0.0
    %412 = vmatprep.subr.mxu0 0.0
    %413 = vmatpush1.xpose.msra.mxu0 0.0
    %414 = vmatprep.subr.mxu0 0.0
    %415 = vmatpush1.xpose.msra.mxu0 0.0
    %416 = vmatprep.subr.mxu0 0.0
    %417 = vmatpush1.xpose.msra.mxu0 0.0
    %418 = vmatprep.subr.mxu0 0.0
    %419 = vmatpush1.xpose.msra.mxu0 0.0
    %420 = vmatprep.subr.mxu0 0.0
    %421 = vmatpush1.xpose.msra.mxu0 0.0
    %422 = vmatprep.subr.mxu0 0.0
    %423 = vmatpush1.xpose.msra.mxu0 0.0
    %424 = vmatprep.subr.mxu0 0.0
    %425 = vmatpush1.xpose.msra.mxu0 0.0
    %426 = vmatprep.subr.mxu0 0.0
    %427 = vmatpush1.xpose.msra.mxu0 0.0
    %428 = vmatprep.subr.mxu0 0.0
    %429 = vmatpush1.xpose.msra.mxu0 0.0
    %430 = vmatprep.subr.mxu0 0.0
    %431 = vmatpush1.xpose.msra.mxu0 0.0
    %432 = vmatprep.subr.mxu0 0.0
    %433 = vmatpush1.xpose.msra.mxu0 0.0
    %434 = vmatprep.subr.mxu0 0.0
    %435 = vmatpush1.xpose.msra.mxu0 0.0
    %436 = vmatprep.subr.mxu0 0.0
    %437 = vmatpush1.xpose.msra.mxu0 0.0
    %438 = vmatprep.subr.mxu0 0.0
    %439 = vmatpush1.xpose.msra.mxu0 0.0
    %440 = vmatprep.subr.mxu0 0.0
    %441 = vmatpush1.xpose.msra.mxu0 0.0
    %442 = vmatprep.mubr.f32.mxu0 0.0
    %443 = vmatmul.mubr.f32.gmra.mrb[0].mxu0 %v374
    %v444 = vpop.f32.mrb[0].mxu0
    %v445 = vadd.f32 0.0, %v444
    %v446 = vpop.f32.mrb[0].mxu0
    %447 = vdwg.mxu0
    %v448 = vsub.f32 %v445, %v67
    %449 = vmatprep.subr.mxu0 0.0
    %450 = vmatpush1.msra.mxu0 %v51
    %451 = vmatprep.subr.mxu0 0.0
    %452 = vmatpush1.msra.mxu0 %v52
    %453 = vmatprep.subr.mxu0 0.0
    %454 = vmatpush1.msra.mxu0 %v53
    %455 = vmatprep.subr.mxu0 0.0
    %456 = vmatpush1.msra.mxu0 %v54
    %457 = vmatprep.subr.mxu0 0.0
    %458 = vmatpush1.msra.mxu0 %v55
    %459 = vmatprep.subr.mxu0 0.0
    %460 = vmatpush1.msra.mxu0 %v56
    %461 = vmatprep.subr.mxu0 0.0
    %462 = vmatpush1.msra.mxu0 %v57
    %463 = vmatprep.subr.mxu0 0.0
    %464 = vmatpush1.msra.mxu0 %v58
    %465 = vmatprep.subr.mxu0 0.0
    %466 = vmatpush1.msra.mxu0 %v59
    %467 = vmatprep.subr.mxu0 0.0
    %468 = vmatpush1.msra.mxu0 %v60
    %469 = vmatprep.subr.mxu0 0.0
    %470 = vmatpush1.msra.mxu0 %v61
    %471 = vmatprep.subr.mxu0 0.0
    %472 = vmatpush1.msra.mxu0 %v62
    %473 = vmatprep.subr.mxu0 0.0
    %474 = vmatpush1.msra.mxu0 %v63
    %475 = vmatprep.subr.mxu0 0.0
    %476 = vmatpush1.msra.mxu0 %v64
    %477 = vmatprep.subr.mxu0 0.0
    %478 = vmatpush1.msra.mxu0 %v65
    %479 = vmatprep.subr.mxu0 0.0
    %480 = vmatpush1.msra.mxu0 %v66
    %481 = vmatprep.subr.mxu0 0.0
    %482 = vmatpush1.msra.mxu0 0.0
    %483 = vmatprep.subr.mxu0 0.0
    %484 = vmatpush1.msra.mxu0 0.0
    %485 = vmatprep.subr.mxu0 0.0
    %486 = vmatpush1.msra.mxu0 0.0
    %487 = vmatprep.subr.mxu0 0.0
    %488 = vmatpush1.msra.mxu0 0.0
    %489 = vmatprep.subr.mxu0 0.0
    %490 = vmatpush1.msra.mxu0 0.0
    %491 = vmatprep.subr.mxu0 0.0
    %492 = vmatpush1.msra.mxu0 0.0
    %493 = vmatprep.subr.mxu0 0.0
    %494 = vmatpush1.msra.mxu0 0.0
    %495 = vmatprep.subr.mxu0 0.0
    %496 = vmatpush1.msra.mxu0 0.0
    %497 = vmatprep.subr.mxu0 0.0
    %498 = vmatpush1.msra.mxu0 0.0
    %499 = vmatprep.subr.mxu0 0.0
    %500 = vmatpush1.msra.mxu0 0.0
    %501 = vmatprep.subr.mxu0 0.0
    %502 = vmatpush1.msra.mxu0 0.0
    %503 = vmatprep.subr.mxu0 0.0
    %504 = vmatpush1.msra.mxu0 0.0
    %505 = vmatprep.subr.mxu0 0.0
    %506 = vmatpush1.msra.mxu0 0.0
    %507 = vmatprep.subr.mxu0 0.0
    %508 = vmatpush1.msra.mxu0 0.0
    %509 = vmatprep.subr.mxu0 0.0
    %510 = vmatpush1.msra.mxu0 0.0
    %511 = vmatprep.subr.mxu0 0.0
    %512 = vmatpush1.msra.mxu0 0.0
    %513 = vmatprep.mubr.f32.mxu0 0.0
    %514 = vmatmul.mubr.f32.gmra.mrb[0].mxu0 %v448
    %v515 = vpop.f32.mrb[0].mxu0
    %v516 = vadd.f32 0.0, %v515
    %v517 = vpop.f32.mrb[0].mxu0
    %518 = vdwg.mxu0
    %v519 = vstv %s375
    %v520 = vmul.f32 %v519, %v516
    %v521 = vsub.f32 %v374, %v520
    %s522 = ssub.f32 0.0, %s377
    %v523 = vstv %s522
    %v524 = vmax.f32 %v523, %v521
    %v525 = vstv %s377
    %v526 = vmin.f32 %v525, %v524
    %v527 = vsub.f32 %v521, %v526
    %s528 = sld [smem:[#allocation3 + $0x3]]
    %s529 = sld [smem:[#allocation4 + $0x3]]
    %s530 = smul.f32 %s528, %s529
    %531 = vmatprep.subr.mxu0 0.0
    %532 = vmatpush1.xpose.msra.mxu0 %v51
    %533 = vmatprep.subr.mxu0 0.0
    %534 = vmatpush1.xpose.msra.mxu0 %v52
    %535 = vmatprep.subr.mxu0 0.0
    %536 = vmatpush1.xpose.msra.mxu0 %v53
    %537 = vmatprep.subr.mxu0 0.0
    %538 = vmatpush1.xpose.msra.mxu0 %v54
    %539 = vmatprep.subr.mxu0 0.0
    %540 = vmatpush1.xpose.msra.mxu0 %v55
    %541 = vmatprep.subr.mxu0 0.0
    %542 = vmatpush1.xpose.msra.mxu0 %v56
    %543 = vmatprep.subr.mxu0 0.0
    %544 = vmatpush1.xpose.msra.mxu0 %v57
    %545 = vmatprep.subr.mxu0 0.0
    %546 = vmatpush1.xpose.msra.mxu0 %v58
    %547 = vmatprep.subr.mxu0 0.0
    %548 = vmatpush1.xpose.msra.mxu0 %v59
    %549 = vmatprep.subr.mxu0 0.0
    %550 = vmatpush1.xpose.msra.mxu0 %v60
    %551 = vmatprep.subr.mxu0 0.0
    %552 = vmatpush1.xpose.msra.mxu0 %v61
    %553 = vmatprep.subr.mxu0 0.0
    %554 = vmatpush1.xpose.msra.mxu0 %v62
    %555 = vmatprep.subr.mxu0 0.0
    %556 = vmatpush1.xpose.msra.mxu0 %v63
    %557 = vmatprep.subr.mxu0 0.0
    %558 = vmatpush1.xpose.msra.mxu0 %v64
    %559 = vmatprep.subr.mxu0 0.0
    %560 = vmatpush1.xpose.msra.mxu0 %v65
    %561 = vmatprep.subr.mxu0 0.0
    %562 = vmatpush1.xpose.msra.mxu0 %v66
    %563 = vmatprep.subr.mxu0 0.0
    %564 = vmatpush1.xpose.msra.mxu0 0.0
    %565 = vmatprep.subr.mxu0 0.0
    %566 = vmatpush1.xpose.msra.mxu0 0.0
    %567 = vmatprep.subr.mxu0 0.0
    %568 = vmatpush1.xpose.msra.mxu0 0.0
    %569 = vmatprep.subr.mxu0 0.0
    %570 = vmatpush1.xpose.msra.mxu0 0.0
    %571 = vmatprep.subr.mxu0 0.0
    %572 = vmatpush1.xpose.msra.mxu0 0.0
    %573 = vmatprep.subr.mxu0 0.0
    %574 = vmatpush1.xpose.msra.mxu0 0.0
    %575 = vmatprep.subr.mxu0 0.0
    %576 = vmatpush1.xpose.msra.mxu0 0.0
    %577 = vmatprep.subr.mxu0 0.0
    %578 = vmatpush1.xpose.msra.mxu0 0.0
    %579 = vmatprep.subr.mxu0 0.0
    %580 = vmatpush1.xpose.msra.mxu0 0.0
    %581 = vmatprep.subr.mxu0 0.0
    %582 = vmatpush1.xpose.msra.mxu0 0.0
    %583 = vmatprep.subr.mxu0 0.0
    %584 = vmatpush1.xpose.msra.mxu0 0.0
    %585 = vmatprep.subr.mxu0 0.0
    %586 = vmatpush1.xpose.msra.mxu0 0.0
    %587 = vmatprep.subr.mxu0 0.0
    %588 = vmatpush1.xpose.msra.mxu0 0.0
    %589 = vmatprep.subr.mxu0 0.0
    %590 = vmatpush1.xpose.msra.mxu0 0.0
    %591 = vmatprep.subr.mxu0 0.0
    %592 = vmatpush1.xpose.msra.mxu0 0.0
    %593 = vmatprep.subr.mxu0 0.0
    %594 = vmatpush1.xpose.msra.mxu0 0.0
    %595 = vmatprep.mubr.f32.mxu0 0.0
    %596 = vmatmul.mubr.f32.gmra.mrb[0].mxu0 %v527
    %v597 = vpop.f32.mrb[0].mxu0
    %v598 = vadd.f32 0.0, %v597
    %v599 = vpop.f32.mrb[0].mxu0
    %600 = vdwg.mxu0
    %v601 = vsub.f32 %v598, %v67
    %602 = vmatprep.subr.mxu0 0.0
    %603 = vmatpush1.msra.mxu0 %v51
    %604 = vmatprep.subr.mxu0 0.0
    %605 = vmatpush1.msra.mxu0 %v52
    %606 = vmatprep.subr.mxu0 0.0
    %607 = vmatpush1.msra.mxu0 %v53
    %608 = vmatprep.subr.mxu0 0.0
    %609 = vmatpush1.msra.mxu0 %v54
    %610 = vmatprep.subr.mxu0 0.0
    %611 = vmatpush1.msra.mxu0 %v55
    %612 = vmatprep.subr.mxu0 0.0
    %613 = vmatpush1.msra.mxu0 %v56
    %614 = vmatprep.subr.mxu0 0.0
    %615 = vmatpush1.msra.mxu0 %v57
    %616 = vmatprep.subr.mxu0 0.0
    %617 = vmatpush1.msra.mxu0 %v58
    %618 = vmatprep.subr.mxu0 0.0
    %619 = vmatpush1.msra.mxu0 %v59
    %620 = vmatprep.subr.mxu0 0.0
    %621 = vmatpush1.msra.mxu0 %v60
    %622 = vmatprep.subr.mxu0 0.0
    %623 = vmatpush1.msra.mxu0 %v61
    %624 = vmatprep.subr.mxu0 0.0
    %625 = vmatpush1.msra.mxu0 %v62
    %626 = vmatprep.subr.mxu0 0.0
    %627 = vmatpush1.msra.mxu0 %v63
    %628 = vmatprep.subr.mxu0 0.0
    %629 = vmatpush1.msra.mxu0 %v64
    %630 = vmatprep.subr.mxu0 0.0
    %631 = vmatpush1.msra.mxu0 %v65
    %632 = vmatprep.subr.mxu0 0.0
    %633 = vmatpush1.msra.mxu0 %v66
    %634 = vmatprep.subr.mxu0 0.0
    %635 = vmatpush1.msra.mxu0 0.0
    %636 = vmatprep.subr.mxu0 0.0
    %637 = vmatpush1.msra.mxu0 0.0
    %638 = vmatprep.subr.mxu0 0.0
    %639 = vmatpush1.msra.mxu0 0.0
    %640 = vmatprep.subr.mxu0 0.0
    %641 = vmatpush1.msra.mxu0 0.0
    %642 = vmatprep.subr.mxu0 0.0
    %643 = vmatpush1.msra.mxu0 0.0
    %644 = vmatprep.subr.mxu0 0.0
    %645 = vmatpush1.msra.mxu0 0.0
    %646 = vmatprep.subr.mxu0 0.0
    %647 = vmatpush1.msra.mxu0 0.0
    %648 = vmatprep.subr.mxu0 0.0
    %649 = vmatpush1.msra.mxu0 0.0
    %650 = vmatprep.subr.mxu0 0.0
    %651 = vmatpush1.msra.mxu0 0.0
    %652 = vmatprep.subr.mxu0 0.0
    %653 = vmatpush1.msra.mxu0 0.0
    %654 = vmatprep.subr.mxu0 0.0
    %655 = vmatpush1.msra.mxu0 0.0
    %656 = vmatprep.subr.mxu0 0.0
    %657 = vmatpush1.msra.mxu0 0.0
    %658 = vmatprep.subr.mxu0 0.0
    %659 = vmatpush1.msra.mxu0 0.0
    %660 = vmatprep.subr.mxu0 0.0
    %661 = vmatpush1.msra.mxu0 0.0
    %662 = vmatprep.subr.mxu0 0.0
    %663 = vmatpush1.msra.mxu0 0.0
    %664 = vmatprep.subr.mxu0 0.0
    %665 = vmatpush1.msra.mxu0 0.0
    %666 = vmatprep.mubr.f32.mxu0 0.0
    %667 = vmatmul.mubr.f32.gmra.mrb[0].mxu0 %v601
    %v668 = vpop.f32.mrb[0].mxu0
    %v669 = vadd.f32 0.0, %v668
    %v670 = vpop.f32.mrb[0].mxu0
    %671 = vdwg.mxu0
    %v672 = vstv %s528
    %v673 = vmul.f32 %v672, %v669
    %v674 = vsub.f32 %v527, %v673
    %s675 = ssub.f32 0.0, %s530
    %v676 = vstv %s675
    %v677 = vmax.f32 %v676, %v674
    %v678 = vstv %s530
    %v679 = vmin.f32 %v678, %v677
    %v680 = vsub.f32 %v674, %v679
    %681 = vst [vmem:[#allocation10] sm:$0xff] %v680
    // Predicated region
    $region22: #{tpu_custom_call.1} parent=1 // pred_check
      _
    $region23: #{tpu_custom_call.1} parent=1 // pred_check_branch
      %683 = sbr.rel (0) target = $region25
    $region24: #{tpu_custom_call.1} parent=1 // pred_region
      %s685 = ssub.s32 128, 128
      %686 = vsyncadd [#allocation7], %s685
      %s688 = sshll.u32 [#allocation10], 4
      %s689 = int_to_ptr.vmem [resolvable:$true] %s688
      %691 = dma.vmem_to_hbm [thread:$0]  %s689, 128, %s5, [#allocation7]
    $region25: #{tpu_custom_call.1} parent=1 // pred_fallthru
      _
    // Predicated region
    $region26: #{tpu_custom_call.1} parent=1 // pred_check
      _
    $region27: #{tpu_custom_call.1} parent=1 // pred_check_branch
      %693 = sbr.rel (0) target = $region29
    $region28: #{tpu_custom_call.1} parent=1 // pred_region
      %694 = dma.done [#allocation7], 128
    $region29: #{tpu_custom_call.1} parent=1 // pred_fallthru
      _
    %695 = vsyncpa [#allocation6], 1
    %696 = vsyncpa [#allocation9], 1
    %697 = vsyncpa [#allocation7], 1

</llo_original>
